<compile_context>
chip_gen: v7x
topology: tpu7x:2x2x1
jax: 0.10.0
libtpu: 0.0.40
codegen_flags: <defaults>
</compile_context>

<pallas_src>
import functools

import jax
import jax.numpy as jnp
from jax import lax
from jax.experimental import pallas as pl
from jax.experimental.pallas import tpu as pltpu


def _nee_kernel(scale_ref, flow_ref, gt_ref, mask_ref, out_ref, acc_ref, *,
                tR, W2, n_rows, n_inner, needs_row_mask):
    """Grid = (batch, row_chunk, row_tile).  Per-tile math is reduced along
    sublanes each step and accumulated into a tiny (3, W2) scratch; one
    lane-dense (3, W2) store per (batch, chunk)."""
    h = pl.program_id(2)

    @pl.when(h == 0)
    def _init():
        acc_ref[...] = jnp.zeros_like(acc_ref)

    scale = scale_ref[0]
    fx = flow_ref[0, 0].astype(jnp.float32) * scale            # (tR, W2)
    fy = flow_ref[0, 1].astype(jnp.float32) * scale
    gx = gt_ref[0, 0].astype(jnp.float32)
    gy = gt_ref[0, 1].astype(jnp.float32)

    dx = fx - gx
    dy = fy - gy
    diff_norm = jnp.sqrt(dx * dx + dy * dy)
    # min and sqrt commute on non-negative values: one EUP sqrt saved.
    denom = jnp.sqrt(jnp.minimum(fx * fx + fy * fy, gx * gx + gy * gy)) + 0.01

    gt_zero = jnp.logical_and(gx == 0.0, gy == 0.0)
    valid = jnp.logical_and(mask_ref[0, 0] != 0, jnp.logical_not(gt_zero))
    if needs_row_mask:
        # Ragged last tile / clamped duplicate block: mask rows beyond the array.
        row0 = (pl.program_id(1) * n_inner + h) * tR
        rows = lax.broadcasted_iota(jnp.int32, (tR, W2), 0) + row0
        valid = jnp.logical_and(valid, rows < n_rows)

    # Outlier threshold tested exactly as a multiply-compare, so the error
    # division itself can use the cheap approximate EUP reciprocal.
    err = diff_norm * pl.reciprocal(denom, approx=True)
    err_m = jnp.where(valid, err, 0.0)                          # NaN-safe masking
    outl = jnp.logical_and(diff_norm > 0.5 * denom, valid)

    # Sublane-only per-tile reduce (XLU slot) -> tiny (3, W2) accumulator add.
    partial = jnp.concatenate(
        [jnp.sum(err_m, axis=0, keepdims=True),
         jnp.sum(valid.astype(jnp.float32), axis=0, keepdims=True),
         jnp.sum(outl.astype(jnp.float32), axis=0, keepdims=True)],
        axis=0)                                                 # (3, W2)
    acc_ref[...] += partial

    @pl.when(h == pl.num_programs(2) - 1)
    def _finalize():
        out_ref[0, 0] = acc_ref[...]


def _plane_layout(H, W):
    """Lane-dense view of an (H, W) plane: (rows, lanes, pad_elems)."""
    if W % 128 == 0:
        return H, W, 0
    n = H * W
    pad = (-n) % 128
    return (n + pad) // 128, 128, pad


def _lane_dense(x, R, W2, pad):
    B, C = x.shape[0], x.shape[1]
    x = x.reshape(B, C, -1)
    if pad:
        x = jnp.pad(x, ((0, 0), (0, 0), (0, pad)))
    return x.reshape(B, C, R, W2)


def _vmem_budget_bytes():
    cap = 64 * 1024 * 1024           # conservative default = v7x per-TC VMEM
    try:
        cap = int(pltpu.get_tpu_info().vmem_capacity_bytes)
    except Exception:
        pass
    return int(cap * 0.7)            # headroom for outputs / compiler scratch


def _pick_row_tile(R, W2, stream_bytes_per_px, vmem_budget,
                   plane_target_bytes=2 * 1024 * 1024):
    """Row tile giving ~2 MiB of f32 work per plane per step, capped so the
    double-buffered input streams fit the VMEM budget.  Ragged R is handled
    by cdiv + in-kernel masking, so no divisibility requirement."""
    t = max(8, plane_target_bytes // (W2 * 4))
    per_row_stream = 2 * stream_bytes_per_px * W2        # 2x = double buffering
    t = min(t, max(8, (vmem_budget - (2 << 20)) // per_row_stream))
    if t >= R:
        return R
    align = 32   # safe for 1-byte mask tiles (int8 native tiling is (32,128))
    t = max(align, (t // align) * align)
    if t >= R:
        return R
    return t


def nee_forward(flow_map, gtflow, event_mask, dt_input, dt_gt,
                flow_scaling=128.0):
    """flow_map, gtflow: [B, 2, H, W]; event_mask: [B, P, H, W] (last pass used,
    any dtype — int8/bool recommended). Returns (NEE per batch, percent_NEE)."""
    B, C, H, W = flow_map.shape
    assert C == 2
    P = event_mask.shape[1]

    R, W2, pad = _plane_layout(H, W)
    flow_r = _lane_dense(flow_map, R, W2, pad)
    gt_r = _lane_dense(gtflow, R, W2, pad)
    mask_r = _lane_dense(event_mask, R, W2, pad)

    vmem_budget = _vmem_budget_bytes()
    stream_bytes_per_px = (2 * flow_map.dtype.itemsize
                           + 2 * gtflow.dtype.itemsize
                           + event_mask.dtype.itemsize)
    tR = _pick_row_tile(R, W2, stream_bytes_per_px, vmem_budget)

    n_blocks = pl.cdiv(R, tR)
    # v7x: when the batch axis alone cannot feed both TensorCores, also split
    # the row-block axis (no-op, size 1, otherwise).
    n_outer = 2 if (B == 1 and n_blocks >= 2) else 1
    n_inner = pl.cdiv(n_blocks, n_outer)
    needs_row_mask = (n_outer * n_inner * tR != R)
    last_blk = n_blocks - 1

    def _blk(o, h):
        # Clamp so a duplicated trailing block never DMAs out of bounds; its
        # contribution is zeroed by the in-kernel row mask.
        return jnp.minimum(o * n_inner + h, last_blk)

    scale = jnp.reshape(
        jnp.float32(flow_scaling)
        * (jnp.asarray(dt_gt, jnp.float32) / jnp.asarray(dt_input, jnp.float32)),
        (1,))

    kernel = functools.partial(_nee_kernel, tR=tR, W2=W2, n_rows=R,
                               n_inner=n_inner, needs_row_mask=needs_row_mask)

    partials = pl.pallas_call(
        kernel,
        out_shape=jax.ShapeDtypeStruct((B, n_outer, 3, W2), jnp.float32),
        grid=(B, n_outer, n_inner),
        in_specs=[
            pl.BlockSpec(memory_space=pltpu.MemorySpace.SMEM),               # scale
            pl.BlockSpec((1, 2, tR, W2), lambda b, o, h: (b, 0, _blk(o, h), 0)),       # flow
            pl.BlockSpec((1, 2, tR, W2), lambda b, o, h: (b, 0, _blk(o, h), 0)),       # gtflow
            pl.BlockSpec((1, 1, tR, W2), lambda b, o, h: (b, P - 1, _blk(o, h), 0)),   # mask[-1]
        ],
        out_specs=pl.BlockSpec((1, 1, 3, W2), lambda b, o, h: (b, o, 0, 0)),
        scratch_shapes=[pltpu.VMEM((3, W2), jnp.float32)],
        compiler_params=pltpu.CompilerParams(
            dimension_semantics=("parallel", "parallel", "arbitrary"),
            vmem_limit_bytes=int(vmem_budget)),
    )(scale, flow_r, gt_r, mask_r)

    sums = jnp.sum(partials, axis=(1, 3))              # (B, 3): tiny XLA reduce
    err_sum = sums[:, 0]
    n_valid = sums[:, 1]
    n_outliers = sums[:, 2]

    nee = err_sum / (n_valid + 1e-9)
    # PyTorch's `outliers.sum()` is a global (all-batch) scalar count divided
    # per-batch — reproduce exactly.
    percent_nee = jnp.sum(n_outliers) / (n_valid + 1e-9)
    return nee, percent_nee


if __name__ == "__main__":
    key = jax.random.PRNGKey(0)
    B, H, W, P = 2, 16, 16, 3
    k1, k2, k3 = jax.random.split(key, 3)

    flow_map = jax.random.normal(k1, (B, 2, H, W), dtype=jnp.float32)
    gtflow = jax.random.normal(k2, (B, 2, H, W), dtype=jnp.float32) * 3.0
    # zero a patch of gtflow so the gtflow==0 mask path is exercised
    gtflow = gtflow.at[:, :, :4, :4].set(0.0)
    # 1 byte / pixel mask at the interface (no wrapper cast needed)
    event_mask = (jax.random.uniform(k3, (B, P, H, W)) > 0.3).astype(jnp.int8)
    dt_input = jnp.float32(0.01)
    dt_gt = jnp.float32(0.04)

    nee, pct = nee_forward(flow_map, gtflow, event_mask, dt_input, dt_gt)
    nee, pct = jax.block_until_ready((nee, pct))

    # pure-JAX reference check (per-pixel denominator semantics, see header)
    scale = 128.0 * (dt_gt / dt_input)
    f = flow_map * scale
    flow_norm = jnp.sqrt(jnp.sum(f ** 2, axis=1))
    gt_norm = jnp.sqrt(jnp.sum(gtflow ** 2, axis=1))
    diff_norm = jnp.sqrt(jnp.sum((f - gtflow) ** 2, axis=1))
    err = diff_norm / (jnp.minimum(flow_norm, gt_norm) + 0.01)
    gtmask = ~((gtflow[:, 0] == 0.0) & (gtflow[:, 1] == 0.0))
    m = (event_mask[:, -1] != 0) & gtmask
    err_m = err * m
    nv = jnp.sum(m.reshape(B, -1), axis=1)
    ref_nee = jnp.sum(err_m.reshape(B, -1), axis=1) / (nv + 1e-9)
    ref_pct = jnp.sum(err_m > 0.5) / (nv + 1e-9)

    # Tolerance covers the approximate EUP reciprocal used for the error sum;
    # the outlier count itself is computed with an exact multiply-compare.
    assert jnp.allclose(nee, ref_nee, rtol=1e-2, atol=1e-3), (nee, ref_nee)
    assert jnp.allclose(pct, ref_pct, rtol=1e-2, atol=1e-3), (pct, ref_pct)
    print("KERNEL_OK")
</pallas_src>

<mosaic_0001>
module attributes {stable_mosaic.version = 11 : i64} {
  func.func @_nee_kernel(%arg0: i32, %arg1: i32, %arg2: i32, %arg3: memref<1xf32, #tpu.memory_space<smem>>, %arg4: memref<1x2x2x128xf32, #tpu.memory_space<vmem>>, %arg5: memref<1x2x2x128xf32, #tpu.memory_space<vmem>>, %arg6: memref<1x1x2x128xi8, #tpu.memory_space<vmem>>, %arg7: memref<1x1x3x128xf32, #tpu.memory_space<vmem>>, %arg8: memref<3x128xf32, #tpu.memory_space<vmem>>) attributes {dimension_semantics = [#tpu.dimension_semantics<parallel>, #tpu.dimension_semantics<parallel>, #tpu.dimension_semantics<arbitrary>], iteration_bounds = array<i64: 2, 1, 1>, scalar_prefetch = 0 : i64, scratch_operands = 1 : i64, tpu.core_type = #tpu.core_type<tc>, window_params = [{transform_indices = @transform_0, window_bounds = array<i64: 1>}, {transform_indices = @transform_1, window_bounds = array<i64: 1, 2, 2, 128>}, {transform_indices = @transform_2, window_bounds = array<i64: 1, 2, 2, 128>}, {transform_indices = @transform_3, window_bounds = array<i64: 1, 1, 2, 128>}, {transform_indices = @transform_4, window_bounds = array<i64: 1, 1, 3, 128>}]} {
    %c0_i32 = arith.constant 0 : i32
    %0 = arith.cmpi eq, %arg2, %c0_i32 : i32
    %1 = arith.extui %0 : i1 to i32
    %c0_i32_0 = arith.constant 0 : i32
    %2 = arith.cmpi ne, %1, %c0_i32_0 : i32
    scf.if %2 {
      %cst_34 = arith.constant 0.000000e+00 : f32
      %68 = vector.broadcast %cst_34 : f32 to vector<3x128xf32>
      %c0_35 = arith.constant 0 : index
      %c0_36 = arith.constant 0 : index
      %69 = vector.load %arg8[%c0_35, %c0_36] : memref<3x128xf32, #tpu.memory_space<vmem>>, vector<3x128xf32>
      tpu.vector_store %arg8[%c0_35, %c0_36], %68 {strides = array<i32>} : memref<3x128xf32, #tpu.memory_space<vmem>>, vector<3x128xf32>,
    } else {
    }
    %c0 = arith.constant 0 : index
    %3 = memref.load %arg3[%c0] : memref<1xf32, #tpu.memory_space<smem>>
    %c0_1 = arith.constant 0 : index
    %c0_2 = arith.constant 0 : index
    %c0_3 = arith.constant 0 : index
    %c0_4 = arith.constant 0 : index
    %4 = vector.load %arg4[%c0_1, %c0_2, %c0_3, %c0_4] : memref<1x2x2x128xf32, #tpu.memory_space<vmem>>, vector<1x1x2x128xf32>
    %5 = vector.shape_cast %4 : vector<1x1x2x128xf32> to vector<2x128xf32>
    %6 = vector.broadcast %3 : f32 to vector<2x128xf32>
    %7 = arith.mulf %5, %6 : vector<2x128xf32>
    %c0_5 = arith.constant 0 : index
    %c1 = arith.constant 1 : index
    %c0_6 = arith.constant 0 : index
    %c0_7 = arith.constant 0 : index
    %8 = vector.load %arg4[%c0_5, %c1, %c0_6, %c0_7] : memref<1x2x2x128xf32, #tpu.memory_space<vmem>>, vector<1x1x2x128xf32>
    %9 = vector.shape_cast %8 : vector<1x1x2x128xf32> to vector<2x128xf32>
    %10 = vector.broadcast %3 : f32 to vector<2x128xf32>
    %11 = arith.mulf %9, %10 : vector<2x128xf32>
    %c0_8 = arith.constant 0 : index
    %c0_9 = arith.constant 0 : index
    %c0_10 = arith.constant 0 : index
    %c0_11 = arith.constant 0 : index
    %12 = vector.load %arg5[%c0_8, %c0_9, %c0_10, %c0_11] : memref<1x2x2x128xf32, #tpu.memory_space<vmem>>, vector<1x1x2x128xf32>
    %13 = vector.shape_cast %12 : vector<1x1x2x128xf32> to vector<2x128xf32>
    %c0_12 = arith.constant 0 : index
    %c1_13 = arith.constant 1 : index
    %c0_14 = arith.constant 0 : index
    %c0_15 = arith.constant 0 : index
    %14 = vector.load %arg5[%c0_12, %c1_13, %c0_14, %c0_15] : memref<1x2x2x128xf32, #tpu.memory_space<vmem>>, vector<1x1x2x128xf32>
    %15 = vector.shape_cast %14 : vector<1x1x2x128xf32> to vector<2x128xf32>
    %16 = arith.subf %7, %13 : vector<2x128xf32>
    %17 = arith.subf %11, %15 : vector<2x128xf32>
    %18 = arith.mulf %16, %16 : vector<2x128xf32>
    %19 = arith.mulf %17, %17 : vector<2x128xf32>
    %20 = arith.addf %18, %19 : vector<2x128xf32>
    %21 = math.sqrt %20 : vector<2x128xf32>
    %22 = arith.mulf %7, %7 : vector<2x128xf32>
    %23 = arith.mulf %11, %11 : vector<2x128xf32>
    %24 = arith.addf %22, %23 : vector<2x128xf32>
    %25 = arith.mulf %13, %13 : vector<2x128xf32>
    %26 = arith.mulf %15, %15 : vector<2x128xf32>
    %27 = arith.addf %25, %26 : vector<2x128xf32>
    %28 = arith.minimumf %24, %27 : vector<2x128xf32>
    %29 = math.sqrt %28 : vector<2x128xf32>
    %cst = arith.constant 0.00999999977 : f32
    %30 = vector.broadcast %cst : f32 to vector<2x128xf32>
    %31 = arith.addf %29, %30 : vector<2x128xf32>
    %cst_16 = arith.constant 0.000000e+00 : f32
    %32 = vector.broadcast %cst_16 : f32 to vector<2x128xf32>
    %33 = arith.cmpf oeq, %13, %32 : vector<2x128xf32>
    %cst_17 = arith.constant 0.000000e+00 : f32
    %34 = vector.broadcast %cst_17 : f32 to vector<2x128xf32>
    %35 = arith.cmpf oeq, %15, %34 : vector<2x128xf32>
    %36 = arith.andi %33, %35 : vector<2x128xi1>
    %c0_18 = arith.constant 0 : index
    %c0_19 = arith.constant 0 : index
    %c0_20 = arith.constant 0 : index
    %c0_21 = arith.constant 0 : index
    %37 = vector.load %arg6[%c0_18, %c0_19, %c0_20, %c0_21] : memref<1x1x2x128xi8, #tpu.memory_space<vmem>>, vector<1x1x2x128xi8>
    %38 = vector.shape_cast %37 : vector<1x1x2x128xi8> to vector<2x128xi8>
    %c0_i8 = arith.constant 0 : i8
    %39 = vector.broadcast %c0_i8 : i8 to vector<2x128xi8>
    %40 = arith.cmpi ne, %38, %39 : vector<2x128xi8>
    %cst_22 = arith.constant dense<true> : vector<2x128xi1>
    %41 = arith.xori %36, %cst_22 : vector<2x128xi1>
    %42 = arith.andi %40, %41 : vector<2x128xi1>
    %43 = tpu.reciprocal %31 {approx = true} : vector<2x128xf32> -> vector<2x128xf32>
    %44 = arith.mulf %21, %43 : vector<2x128xf32>
    %cst_23 = arith.constant 0.000000e+00 : f32
    %45 = vector.broadcast %cst_23 : f32 to vector<2x128xf32>
    %46 = arith.select %42, %44, %45 : vector<2x128xi1>, vector<2x128xf32>
    %cst_24 = arith.constant 5.000000e-01 : f32
    %47 = vector.broadcast %cst_24 : f32 to vector<2x128xf32>
    %48 = arith.mulf %47, %31 : vector<2x128xf32>
    %49 = arith.cmpf ogt, %21, %48 : vector<2x128xf32>
    %50 = arith.andi %49, %42 : vector<2x128xi1>
    %cst_25 = arith.constant dense<0.000000e+00> : vector<128xf32>
    %51 = vector.multi_reduction <add>, %46, %cst_25 [0] : vector<2x128xf32> to vector<128xf32>
    %52 = vector.shape_cast %51 : vector<128xf32> to vector<1x128xf32>
    %53 = arith.extui %42 : vector<2x128xi1> to vector<2x128xi32>
    %54 = arith.sitofp %53 : vector<2x128xi32> to vector<2x128xf32>
    %cst_26 = arith.constant dense<0.000000e+00> : vector<128xf32>
    %55 = vector.multi_reduction <add>, %54, %cst_26 [0] : vector<2x128xf32> to vector<128xf32>
    %56 = vector.shape_cast %55 : vector<128xf32> to vector<1x128xf32>
    %57 = arith.extui %50 : vector<2x128xi1> to vector<2x128xi32>
    %58 = arith.sitofp %57 : vector<2x128xi32> to vector<2x128xf32>
    %cst_27 = arith.constant dense<0.000000e+00> : vector<128xf32>
    %59 = vector.multi_reduction <add>, %58, %cst_27 [0] : vector<2x128xf32> to vector<128xf32>
    %60 = vector.shape_cast %59 : vector<128xf32> to vector<1x128xf32>
    %61 = tpu.concatenate %52, %56, %60 in 0 : vector<1x128xf32>, vector<1x128xf32>, vector<1x128xf32> -> vector<3x128xf32>
    %c0_28 = arith.constant 0 : index
    %c0_29 = arith.constant 0 : index
    %62 = vector.load %arg8[%c0_28, %c0_29] : memref<3x128xf32, #tpu.memory_space<vmem>>, vector<3x128xf32>
    %63 = arith.addf %62, %61 : vector<3x128xf32>
    %c0_30 = arith.constant 0 : index
    %c0_31 = arith.constant 0 : index
    %64 = vector.load %arg8[%c0_30, %c0_31] : memref<3x128xf32, #tpu.memory_space<vmem>>, vector<3x128xf32>
    tpu.vector_store %arg8[%c0_30, %c0_31], %63 {strides = array<i32>} : memref<3x128xf32, #tpu.memory_space<vmem>>, vector<3x128xf32>,
    %c0_i32_32 = arith.constant 0 : i32
    %65 = arith.cmpi eq, %arg2, %c0_i32_32 : i32
    %66 = arith.extui %65 : i1 to i32
    %c0_i32_33 = arith.constant 0 : i32
    %67 = arith.cmpi ne, %66, %c0_i32_33 : i32
    scf.if %67 {
      %c0_34 = arith.constant 0 : index
      %c0_35 = arith.constant 0 : index
      %68 = vector.load %arg8[%c0_34, %c0_35] : memref<3x128xf32, #tpu.memory_space<vmem>>, vector<3x128xf32>
      %c0_36 = arith.constant 0 : index
      %c0_37 = arith.constant 0 : index
      %c0_38 = arith.constant 0 : index
      %c0_39 = arith.constant 0 : index
      %69 = vector.load %arg7[%c0_36, %c0_37, %c0_38, %c0_39] : memref<1x1x3x128xf32, #tpu.memory_space<vmem>>, vector<1x1x3x128xf32>
      %70 = vector.shape_cast %69 : vector<1x1x3x128xf32> to vector<3x128xf32>
      %71 = vector.shape_cast %68 : vector<3x128xf32> to vector<1x1x3x128xf32>
      tpu.vector_store %arg7[%c0_36, %c0_37, %c0_38, %c0_39], %71 {strides = array<i32>} : memref<1x1x3x128xf32, #tpu.memory_space<vmem>>, vector<1x1x3x128xf32>,
    } else {
    }
    return
  }
  func.func @transform_0(%arg0: i32, %arg1: i32, %arg2: i32) -> i32 {
    %c0_i32 = arith.constant 0 : i32
    %c0_i32_0 = arith.constant 0 : i32
    return %c0_i32 : i32
  }
  func.func @transform_1(%arg0: i32, %arg1: i32, %arg2: i32) -> (i32, i32, i32, i32) {
    %c1_i32 = arith.constant 1 : i32
    %0 = arith.muli %arg1, %c1_i32 : i32
    %1 = arith.addi %0, %arg2 : i32
    %c0_i32 = arith.constant 0 : i32
    %2 = arith.minsi %1, %c0_i32 : i32
    %c0_i32_0 = arith.constant 0 : i32
    %c0_i32_1 = arith.constant 0 : i32
    %c0_i32_2 = arith.constant 0 : i32
    return %arg0, %c0_i32_0, %2, %c0_i32_1 : i32, i32, i32, i32
  }
  func.func @transform_2(%arg0: i32, %arg1: i32, %arg2: i32) -> (i32, i32, i32, i32) {
    %c1_i32 = arith.constant 1 : i32
    %0 = arith.muli %arg1, %c1_i32 : i32
    %1 = arith.addi %0, %arg2 : i32
    %c0_i32 = arith.constant 0 : i32
    %2 = arith.minsi %1, %c0_i32 : i32
    %c0_i32_0 = arith.constant 0 : i32
    %c0_i32_1 = arith.constant 0 : i32
    %c0_i32_2 = arith.constant 0 : i32
    return %arg0, %c0_i32_0, %2, %c0_i32_1 : i32, i32, i32, i32
  }
  func.func @transform_3(%arg0: i32, %arg1: i32, %arg2: i32) -> (i32, i32, i32, i32) {
    %c1_i32 = arith.constant 1 : i32
    %0 = arith.muli %arg1, %c1_i32 : i32
    %1 = arith.addi %0, %arg2 : i32
    %c0_i32 = arith.constant 0 : i32
    %2 = arith.minsi %1, %c0_i32 : i32
    %c2_i32 = arith.constant 2 : i32
    %c0_i32_0 = arith.constant 0 : i32
    %c0_i32_1 = arith.constant 0 : i32
    return %arg0, %c2_i32, %2, %c0_i32_0 : i32, i32, i32, i32
  }
  func.func @transform_4(%arg0: i32, %arg1: i32, %arg2: i32) -> (i32, i32, i32, i32) {
    %c0_i32 = arith.constant 0 : i32
    %c0_i32_0 = arith.constant 0 : i32
    %c0_i32_1 = arith.constant 0 : i32
    return %arg0, %arg1, %c0_i32, %c0_i32_0 : i32, i32, i32, i32
  }
}

</mosaic_0001>

<llo_original>
// kernel: tpu_custom_call.1
$region0: #{tpu_custom_call.1}
  #allocation0 [shape = 'u32[]', space=smem, size = 0x4, offset = 0x4, fixed_abs, tag = 'smem constant byte address 0x4 - core index']
  #allocation1 [shape = 'u32[144,128]{1,0:T(1,128)}', space=vmem, size = 0x12000, scoped, tag = 'internal scratch']
  #allocation2 [shape = 'f32[3,128]{1,0:T(4,128)}', space=vmem, size = 0x800, scoped, tag = 'scratch operand']
  #allocation3 [shape = 'f32[1]{0:T(128)S(6)}', space=smem, size = 0x200, scoped, tag = 'scoped memory for tpu_custom_call.1']
  %s0 = inlined_call_operand.<no memory space> [shape: f32[1], index: 0, kind: input, shape index: {}]
  %s1 = inlined_call_operand.vmem [shape: f32[2,2,2,128], index: 1, kind: input, shape index: {}]
  %s2 = inlined_call_operand.vmem [shape: f32[2,2,2,128], index: 2, kind: input, shape index: {}]
  %s3 = inlined_call_operand.vmem [shape: s8[2,3,2,128], index: 3, kind: input, shape index: {}]
  %s4 = inlined_call_operand.vmem [shape: f32[2,1,3,128], index: 4, kind: output, shape index: {}]
  %s5 = sld [smem:[#allocation0]]
  $region57: #{tpu_custom_call.1} parent=0
    _
  %s7 = ssub.s32 1, %s5
  %s8 = scalar_select 0, %s7, %s5
  %9 = sst [smem:[#allocation3]] %s0
  loop: start=0, step=1, limit=4
  $region2: #{tpu_custom_call.1} parent=0 // loop_pre_header
    _
  $region3: #{tpu_custom_call.1} parent=0 // loop_header
    %s11 = sphi 0, %s15
    %p12 = scmp.ge.s32.totalorder %s11, 4
    %s18 = sphi 0, %s37
    %s19 = sphi 0, %s33
    %s20 = sphi 0, %s29
    %s21 = sphi 0, %s18
    %s22 = sphi 0, %s19
    %s23 = sphi 0, %s20
    %s24 = sphi 0, %s21
    %s25 = sphi 0, %s22
    %s26 = sphi 0, %s23
    %s38 = sphi 0, %s38
    %s40 = sphi 0, %s38
    %s41 = sphi 0, %s40
    %s55 = sphi 0, %s41
    %s69 = sphi 0, %s71
    %s72 = sphi 0, %s69
    %s73 = sphi 0, %s72
    %s89 = sphi 0, %s73
    %s103 = sphi 0, %s105
    %s106 = sphi 0, %s103
    %s107 = sphi 0, %s106
    %s123 = sphi 0, %s107
    %s137 = sphi 0, %s139
    %s140 = sphi 0, %s137
    %s141 = sphi 0, %s140
    %s157 = sphi 0, %s141
    %s165 = sphi 0, %s167
    %s168 = sphi 0, %s165
    %s169 = sphi 0, %s168
    %s185 = sphi 0, %s169
  $region4: #{tpu_custom_call.1} parent=0 // loop_header_branch
    %14 = sbr.rel (%p12) target = $region8
  $region5: #{tpu_custom_call.1} parent=0 // loop_body
    %s16 = ssub.s32 %s11, 1
    %s17 = ssub.s32 %s11, 2
    %s27 = sadd.s32 1, %s20
    %p28 = scmp.ge.s32.totalorder %s27, 1
    %s29 = scalar_select %p28, 0, %s27
    %s30 = sadd.s32 1, %s19
    %s31 = scalar_select %p28, %s30, %s19
    %p32 = scmp.ge.s32.totalorder %s31, 1
    %s33 = scalar_select %p32, 0, %s31
    %s34 = sadd.s32 1, %s18
    %s35 = scalar_select %p32, %s34, %s18
    %p36 = scmp.ge.s32.totalorder %s35, 2
    %s37 = scalar_select %p36, 0, %s35
    %s39 = sadd.s32 %s38, 1
    %p42 = scmp.eq.s32.totalorder %s11, 1
    %p43 = scmp.ne.s32.totalorder %s38, %s40
    %p44 = scmp.eq.s32.totalorder %s11, 0
    %p45 = por %p43, %p44
    %p46 = scmp.ne.s32.totalorder %s38, %s40
    %p47 = scmp.eq.s32.totalorder %s16, 1
    %p48 = por %p46, %p47
    %p49 = scmp.ne.s32.totalorder %s40, %s41
    %p50 = scmp.eq.s32.totalorder %s16, 0
    %p51 = por %p49, %p50
    %p52 = scmp.ne.s32.totalorder %s40, %s41
    %p53 = scmp.eq.s32.totalorder %s17, 1
    %p54 = por %p52, %p53
    %p56 = scmp.ne.s32.totalorder %s41, %s55
    %p57 = scmp.eq.s32.totalorder %s17, 0
    %p58 = por %p56, %p57
    %s59 = sadd.s32 %s19, %s20
    %p60 = scmp.lt.s32.totalorder %s59, 0
    %s61 = scalar_select %p60, %s59, 0
    %s62 = sadd.s32 %s33, %s29
    %p63 = scmp.lt.s32.totalorder %s62, 0
    %s64 = scalar_select %p63, %s62, 0
    %s65 = ssub.s32 %s18, %s37
    %s66 = ssub.s32 %s61, %s64
    %s67 = sor.u32 %s65, %s66
    %p68 = scmp.eq.s32.totalorder %s67, 0
    %s70 = sadd.s32 %s69, 1
    %s71 = scalar_select %p68, %s69, %s70
    %p74 = pneg %p68
    %p75 = scmp.eq.s32.totalorder %s11, 1
    %p76 = por %p74, %p75
    %p77 = scmp.ne.s32.totalorder %s69, %s72
    %p78 = scmp.eq.s32.totalorder %s11, 0
    %p79 = por %p77, %p78
    %p80 = scmp.ne.s32.totalorder %s69, %s72
    %p81 = scmp.eq.s32.totalorder %s16, 1
    %p82 = por %p80, %p81
    %p83 = scmp.ne.s32.totalorder %s72, %s73
    %p84 = scmp.eq.s32.totalorder %s16, 0
    %p85 = por %p83, %p84
    %p86 = scmp.ne.s32.totalorder %s72, %s73
    %p87 = scmp.eq.s32.totalorder %s17, 1
    %p88 = por %p86, %p87
    %p90 = scmp.ne.s32.totalorder %s73, %s89
    %p91 = scmp.eq.s32.totalorder %s17, 0
    %p92 = por %p90, %p91
    %s93 = sadd.s32 %s19, %s20
    %p94 = scmp.lt.s32.totalorder %s93, 0
    %s95 = scalar_select %p94, %s93, 0
    %s96 = sadd.s32 %s33, %s29
    %p97 = scmp.lt.s32.totalorder %s96, 0
    %s98 = scalar_select %p97, %s96, 0
    %s99 = ssub.s32 %s18, %s37
    %s100 = ssub.s32 %s95, %s98
    %s101 = sor.u32 %s99, %s100
    %p102 = scmp.eq.s32.totalorder %s101, 0
    %s104 = sadd.s32 %s103, 1
    %s105 = scalar_select %p102, %s103, %s104
    %p108 = pneg %p102
    %p109 = scmp.eq.s32.totalorder %s11, 1
    %p110 = por %p108, %p109
    %p111 = scmp.ne.s32.totalorder %s103, %s106
    %p112 = scmp.eq.s32.totalorder %s11, 0
    %p113 = por %p111, %p112
    %p114 = scmp.ne.s32.totalorder %s103, %s106
    %p115 = scmp.eq.s32.totalorder %s16, 1
    %p116 = por %p114, %p115
    %p117 = scmp.ne.s32.totalorder %s106, %s107
    %p118 = scmp.eq.s32.totalorder %s16, 0
    %p119 = por %p117, %p118
    %p120 = scmp.ne.s32.totalorder %s106, %s107
    %p121 = scmp.eq.s32.totalorder %s17, 1
    %p122 = por %p120, %p121
    %p124 = scmp.ne.s32.totalorder %s107, %s123
    %p125 = scmp.eq.s32.totalorder %s17, 0
    %p126 = por %p124, %p125
    %s127 = sadd.s32 %s19, %s20
    %p128 = scmp.lt.s32.totalorder %s127, 0
    %s129 = scalar_select %p128, %s127, 0
    %s130 = sadd.s32 %s33, %s29
    %p131 = scmp.lt.s32.totalorder %s130, 0
    %s132 = scalar_select %p131, %s130, 0
    %s133 = ssub.s32 %s18, %s37
    %s134 = ssub.s32 %s129, %s132
    %s135 = sor.u32 %s133, %s134
    %p136 = scmp.eq.s32.totalorder %s135, 0
    %s138 = sadd.s32 %s137, 1
    %s139 = scalar_select %p136, %s137, %s138
    %p142 = pneg %p136
    %p143 = scmp.eq.s32.totalorder %s11, 1
    %p144 = por %p142, %p143
    %p145 = scmp.ne.s32.totalorder %s137, %s140
    %p146 = scmp.eq.s32.totalorder %s11, 0
    %p147 = por %p145, %p146
    %p148 = scmp.ne.s32.totalorder %s137, %s140
    %p149 = scmp.eq.s32.totalorder %s16, 1
    %p150 = por %p148, %p149
    %p151 = scmp.ne.s32.totalorder %s140, %s141
    %p152 = scmp.eq.s32.totalorder %s16, 0
    %p153 = por %p151, %p152
    %p154 = scmp.ne.s32.totalorder %s140, %s141
    %p155 = scmp.eq.s32.totalorder %s17, 1
    %p156 = por %p154, %p155
    %p158 = scmp.ne.s32.totalorder %s141, %s157
    %p159 = scmp.eq.s32.totalorder %s17, 0
    %p160 = por %p158, %p159
    %s161 = ssub.s32 %s18, %s37
    %s162 = ssub.s32 %s19, %s33
    %s163 = sor.u32 %s161, %s162
    %p164 = scmp.eq.s32.totalorder %s163, 0
    %s166 = sadd.s32 %s165, 1
    %s167 = scalar_select %p164, %s165, %s166
    %p170 = pneg %p164
    %p171 = scmp.eq.s32.totalorder %s11, 1
    %p172 = por %p170, %p171
    %p173 = scmp.ne.s32.totalorder %s165, %s168
    %p174 = scmp.eq.s32.totalorder %s11, 0
    %p175 = por %p173, %p174
    %p176 = scmp.ne.s32.totalorder %s165, %s168
    %p177 = scmp.eq.s32.totalorder %s16, 1
    %p178 = por %p176, %p177
    %p179 = scmp.ne.s32.totalorder %s168, %s169
    %p180 = scmp.eq.s32.totalorder %s16, 0
    %p181 = por %p179, %p180
    %p182 = scmp.ne.s32.totalorder %s168, %s169
    %p183 = scmp.eq.s32.totalorder %s17, 1
    %p184 = por %p182, %p183
    %p186 = scmp.ne.s32.totalorder %s169, %s185
    %p187 = scmp.eq.s32.totalorder %s17, 0
    %p188 = por %p186, %p187
    %p189 = scmp.le.s32.totalorder 1, %s11
    %p190 = scmp.lt.s32.totalorder %s11, 3
    %p191 = pnand %p189, %p190
    %p192 = pneg %p191
    // Predicated region
    $region9: #{tpu_custom_call.1} parent=5 // pred_check
      _
    $region10: #{tpu_custom_call.1} parent=5 // pred_check_branch
      %194 = sbr.rel (%p191) target = $region12
    $region11: #{tpu_custom_call.1} parent=5 // pred_region
      %s195 = ssub.s32 %s11, 1
      // Predicated region
      $region13: #{tpu_custom_call.1} parent=11 // pred_check
        %p196 = pneg %p51
      $region14: #{tpu_custom_call.1} parent=11 // pred_check_branch
        %198 = sbr.rel (%p196) target = $region16
      $region15: #{tpu_custom_call.1} parent=11 // pred_region
        _
      $region16: #{tpu_custom_call.1} parent=11 // pred_fallthru
        _
    $region12: #{tpu_custom_call.1} parent=5 // pred_fallthru
      _
    %p199 = scmp.lt.s32.totalorder %s11, 2
    // Predicated region
    $region17: #{tpu_custom_call.1} parent=5 // pred_check
      %p200 = pneg %p199
    $region18: #{tpu_custom_call.1} parent=5 // pred_check_branch
      %202 = sbr.rel (%p200) target = $region20
    $region19: #{tpu_custom_call.1} parent=5 // pred_region
      // Predicated region
      $region21: #{tpu_custom_call.1} parent=19 // pred_check
        %p203 = pneg %p79
      $region22: #{tpu_custom_call.1} parent=19 // pred_check_branch
        %205 = sbr.rel (%p203) target = $region24
      $region23: #{tpu_custom_call.1} parent=19 // pred_region
        %s206 = sadd.s32 %s19, %s20
        %p207 = scmp.lt.s32.totalorder %s206, 0
        %s208 = scalar_select %p207, %s206, 0
        %p209 = scmp.lt.s32.totalorder %s18, 1
        %s210 = scalar_select %p209, %s18, 1
        %p211 = scmp.lt.s32.totalorder %s208, 0
        %s212 = scalar_select %p211, %s208, 0
        %s213 = smul.addr %s210, 2
        %s214 = sadd.s32 %s212, %s213
        %s215 = smul.addr %s214, 2
        %s216 = scalar_lea.vmem %s1, %s215
        %s217 = sadd.s32 %s19, %s20
        %p218 = scmp.lt.s32.totalorder %s217, 0
        %s219 = scalar_select %p218, %s217, 0
      $region24: #{tpu_custom_call.1} parent=19 // pred_fallthru
        _
      // Predicated region
      $region25: #{tpu_custom_call.1} parent=19 // pred_check
        %p220 = pneg %p113
      $region26: #{tpu_custom_call.1} parent=19 // pred_check_branch
        %222 = sbr.rel (%p220) target = $region28
      $region27: #{tpu_custom_call.1} parent=19 // pred_region
        %s223 = sadd.s32 %s19, %s20
        %p224 = scmp.lt.s32.totalorder %s223, 0
        %s225 = scalar_select %p224, %s223, 0
        %p226 = scmp.lt.s32.totalorder %s18, 1
        %s227 = scalar_select %p226, %s18, 1
        %p228 = scmp.lt.s32.totalorder %s225, 0
        %s229 = scalar_select %p228, %s225, 0
        %s230 = smul.addr %s227, 2
        %s231 = sadd.s32 %s229, %s230
        %s232 = smul.addr %s231, 2
        %s233 = scalar_lea.vmem %s2, %s232
        %s234 = sadd.s32 %s19, %s20
        %p235 = scmp.lt.s32.totalorder %s234, 0
        %s236 = scalar_select %p235, %s234, 0
      $region28: #{tpu_custom_call.1} parent=19 // pred_fallthru
        _
      // Predicated region
      $region29: #{tpu_custom_call.1} parent=19 // pred_check
        %p237 = pneg %p147
      $region30: #{tpu_custom_call.1} parent=19 // pred_check_branch
        %239 = sbr.rel (%p237) target = $region32
      $region31: #{tpu_custom_call.1} parent=19 // pred_region
        %s240 = sadd.s32 %s19, %s20
        %p241 = scmp.lt.s32.totalorder %s240, 0
        %s242 = scalar_select %p241, %s240, 0
        %p243 = scmp.lt.s32.totalorder %s18, 1
        %s244 = scalar_select %p243, %s18, 1
        %p245 = scmp.lt.s32.totalorder %s242, 0
        %s246 = scalar_select %p245, %s242, 0
        %s247 = sadd.s32 %s246, 2
        %s248 = smul.addr %s244, 3
        %s249 = sadd.s32 %s247, %s248
        %s250 = scalar_lea.vmem %s3, %s249
        %s251 = sadd.s32 %s19, %s20
        %p252 = scmp.lt.s32.totalorder %s251, 0
        %s253 = scalar_select %p252, %s251, 0
      $region32: #{tpu_custom_call.1} parent=19 // pred_fallthru
        _
    $region20: #{tpu_custom_call.1} parent=5 // pred_fallthru
      _
    %p254 = scmp.le.s32.totalorder 1, %s11
    %p255 = scmp.lt.s32.totalorder %s11, 3
    %p256 = pnand %p254, %p255
    %p257 = pneg %p256
    // Predicated region
    $region33: #{tpu_custom_call.1} parent=5 // pred_check
      _
    $region34: #{tpu_custom_call.1} parent=5 // pred_check_branch
      %259 = sbr.rel (%p256) target = $region36
    $region35: #{tpu_custom_call.1} parent=5 // pred_region
      %s260 = ssub.s32 %s11, 1
      %p261 = pneg %p51
      %p262 = pneg %p48
      %s263 = sadd.s32 %s22, %s23
      %p264 = scmp.lt.s32.totalorder %s263, 0
      %s265 = scalar_select %p264, %s263, 0
      %p266 = scmp.lt.s32.totalorder %s21, 1
      %s267 = scalar_select %p266, %s21, 1
      %p268 = scmp.lt.s32.totalorder %s265, 0
      %s269 = scalar_select %p268, %s265, 0
      %s270 = smul.addr %s267, 2
      %s271 = sadd.s32 %s269, %s270
      %s272 = smul.addr %s271, 2
      %s273 = scalar_lea.vmem %s1, %s272
      %p274 = pneg %p85
      %p275 = pneg %p82
      %s276 = sadd.s32 %s22, %s23
      %p277 = scmp.lt.s32.totalorder %s276, 0
      %s278 = scalar_select %p277, %s276, 0
      %p279 = scmp.lt.s32.totalorder %s21, 1
      %s280 = scalar_select %p279, %s21, 1
      %p281 = scmp.lt.s32.totalorder %s278, 0
      %s282 = scalar_select %p281, %s278, 0
      %s283 = smul.addr %s280, 2
      %s284 = sadd.s32 %s282, %s283
      %s285 = smul.addr %s284, 2
      %s286 = scalar_lea.vmem %s2, %s285
      %p287 = pneg %p119
      %p288 = pneg %p116
      %s289 = sadd.s32 %s22, %s23
      %p290 = scmp.lt.s32.totalorder %s289, 0
      %s291 = scalar_select %p290, %s289, 0
      %p292 = scmp.lt.s32.totalorder %s21, 1
      %s293 = scalar_select %p292, %s21, 1
      %p294 = scmp.lt.s32.totalorder %s291, 0
      %s295 = scalar_select %p294, %s291, 0
      %s296 = sadd.s32 %s295, 2
      %s297 = smul.addr %s293, 3
      %s298 = sadd.s32 %s296, %s297
      %s299 = scalar_lea.vmem %s3, %s298
      %p300 = pneg %p153
      %p301 = pneg %p150
      %p302 = pneg %p181
      %p303 = pneg %p178
      %p304 = scmp.lt.s32.totalorder %s21, 1
      %s305 = scalar_select %p304, %s21, 1
      %p306 = scmp.lt.s32.totalorder %s22, 0
      %s307 = scalar_select %p306, %s22, 0
      %s308 = sadd.s32 %s307, %s305
      %s309 = smul.addr %s308, 4
      %s310 = scalar_lea.vmem %s4, %s309
      %s311 = sadd.s32 %s22, %s23
      %p312 = scmp.lt.s32.totalorder %s311, 0
      %s313 = scalar_select %p312, %s311, 0
      %p314 = scmp.lt.s32.totalorder %s21, 1
      %s315 = scalar_select %p314, %s21, 1
      %p316 = scmp.lt.s32.totalorder %s313, 0
      %s317 = scalar_select %p316, %s313, 0
      %s318 = smul.addr %s315, 2
      %s319 = sadd.s32 %s317, %s318
      %s320 = smul.addr %s319, 2
      %s321 = scalar_lea.vmem %s1, %s320
      %s322 = sadd.s32 %s22, %s23
      %p323 = scmp.lt.s32.totalorder %s322, 0
      %s324 = scalar_select %p323, %s322, 0
      %s325 = sadd.s32 %s22, %s23
      %p326 = scmp.lt.s32.totalorder %s325, 0
      %s327 = scalar_select %p326, %s325, 0
      %p328 = scmp.lt.s32.totalorder %s21, 1
      %s329 = scalar_select %p328, %s21, 1
      %p330 = scmp.lt.s32.totalorder %s327, 0
      %s331 = scalar_select %p330, %s327, 0
      %s332 = smul.addr %s329, 2
      %s333 = sadd.s32 %s331, %s332
      %s334 = smul.addr %s333, 2
      %s335 = scalar_lea.vmem %s2, %s334
      %s336 = sadd.s32 %s22, %s23
      %p337 = scmp.lt.s32.totalorder %s336, 0
      %s338 = scalar_select %p337, %s336, 0
      %s339 = sadd.s32 %s22, %s23
      %p340 = scmp.lt.s32.totalorder %s339, 0
      %s341 = scalar_select %p340, %s339, 0
      %p342 = scmp.lt.s32.totalorder %s21, 1
      %s343 = scalar_select %p342, %s21, 1
      %p344 = scmp.lt.s32.totalorder %s341, 0
      %s345 = scalar_select %p344, %s341, 0
      %s346 = sadd.s32 %s345, 2
      %s347 = smul.addr %s343, 3
      %s348 = sadd.s32 %s346, %s347
      %s349 = scalar_lea.vmem %s3, %s348
      %s350 = sadd.s32 %s22, %s23
      %p351 = scmp.lt.s32.totalorder %s350, 0
      %s352 = scalar_select %p351, %s350, 0
      %p353 = scmp.lt.s32.totalorder %s21, 1
      %s354 = scalar_select %p353, %s21, 1
      %p355 = scmp.lt.s32.totalorder %s22, 0
      %s356 = scalar_select %p355, %s22, 0
      %s357 = sadd.s32 %s356, %s354
      %s358 = smul.addr %s357, 4
      %s359 = scalar_lea.vmem %s4, %s358
      %p362 = scmp.eq.s32.totalorder %s23, 0
      // Predicated region
      $region37: #{tpu_custom_call.1} parent=35 // pred_check
        %p363 = pneg %p362
      $region38: #{tpu_custom_call.1} parent=35 // pred_check_branch
        %365 = sbr.rel (%p363) target = $region40
      $region39: #{tpu_custom_call.1} parent=35 // pred_region
        %366 = vst [vmem:[#allocation2] sm:$0x7] 0.0
      $region40: #{tpu_custom_call.1} parent=35 // pred_fallthru
        _
      %s367 = sld [smem:[#allocation3]]
      %v368 = vld [vmem:[%s321] sm:$0x3]
      %v369 = vstv %s367
      %v370 = vmul.f32 %v368, %v369
      %s371 = scalar_lea.vmem %s321, 2
      %v372 = vld [vmem:[%s371] sm:$0x3]
      %v373 = vmul.f32 %v372, %v369
      %v374 = vld [vmem:[%s335] sm:$0x3]
      %s375 = scalar_lea.vmem %s335, 2
      %v376 = vld [vmem:[%s375] sm:$0x3]
      %v377 = vsub.f32 %v370, %v374
      %v378 = vsub.f32 %v373, %v376
      %v379 = vmul.f32 %v377, %v377
      %v380 = vmul.f32 %v378, %v378
      %v381 = vadd.f32 %v379, %v380
      %v382 = vrsqrt.pop %v381
      %v383 = vmul.f32 %v381, %v382
      %vm384 = vcmp.eq.f32.partialorder %v381, inf
      %v385 = vsel %vm384, %v381, %v383
      %vm386 = vcmp.eq.f32.partialorder %v381, 0.0
      %v387 = vand.u32 %v381, 2147483648
      %v388 = vsel %vm386, %v387, %v385
      %v389 = vmul.f32 %v370, %v370
      %v390 = vmul.f32 %v373, %v373
      %v391 = vadd.f32 %v389, %v390
      %v392 = vmul.f32 %v374, %v374
      %v393 = vmul.f32 %v376, %v376
      %v394 = vadd.f32 %v392, %v393
      %v395 = vmin.f32 %v391, %v394
      %v396 = vrsqrt.pop %v395
      %v397 = vmul.f32 %v395, %v396
      %vm398 = vcmp.eq.f32.partialorder %v395, inf
      %v399 = vsel %vm398, %v395, %v397
      %vm400 = vcmp.eq.f32.partialorder %v395, 0.0
      %v401 = vand.u32 %v395, 2147483648
      %v402 = vsel %vm400, %v401, %v399
      %v403 = vadd.f32 %v402, 0.01
      %vm404 = vcmp.eq.f32.partialorder %v374, 0.0
      %vm405 = vcmp.eq.f32.partialorder %v376, 0.0
      %vm406 = vmand %vm404, %vm405
      %v407 = vld [vmem:[%s349] sm:$0x1]
      %vm408 = vnez %v407
      %vm409 = vmxor %vm406, 1
      %v410 = vsel %vm409, 1, 0
      %v411 = vpack.c.b16 %v410, %v410
      %v412 = vpack.c.b8 %v411, %v411
      %vm413 = vnez %v412
      %vm414 = vmand %vm408, %vm413
      %v415 = vrcp.pop %v403
      %v416 = vmul.f32 %v388, %v415
      %v417 = vsel %vm414, 16843009, 0
      %v418 = vunpack.c.0.s8 %v417
      %vm419 = vcmp.ne.s32.totalorder %v418, 0
      %v420 = vsel %vm419, %v416, 0.0
      %v421 = vmul.f32 %v403, 0.5
      %vm422 = vcmp.gt.f32.partialorder %v388, %v421
      %vm423 = vmand %vm422, %vm419
      %vm424 = vcmask 1041408
      %v425 = vsel %vm424, %v420, 0.0
      %v426 = vrot.slane %v425, 4
      %v427 = vadd.f32 %v425, %v426
      %v428 = vrot.slane %v427, 2
      %v429 = vadd.f32 %v427, %v428
      %v430 = vrot.slane %v429, 1
      %v431 = vadd.f32 %v429, %v430
      %v432 = vsel %vm419, 1, 0
      %v433 = vcvt.s32.f32 %v432
      %v434 = vsel %vm424, %v433, 0.0
      %v435 = vrot.slane %v434, 4
      %v436 = vadd.f32 %v434, %v435
      %v437 = vrot.slane %v436, 2
      %v438 = vadd.f32 %v436, %v437
      %v439 = vrot.slane %v438, 1
      %v440 = vadd.f32 %v438, %v439
      %v441 = vsel %vm423, 1, 0
      %v442 = vcvt.s32.f32 %v441
      %v443 = vsel %vm424, %v442, 0.0
      %v444 = vrot.slane %v443, 4
      %v445 = vadd.f32 %v443, %v444
      %v446 = vrot.slane %v445, 2
      %v447 = vadd.f32 %v445, %v446
      %v448 = vrot.slane %v447, 1
      %v449 = vadd.f32 %v447, %v448
      %vm450 = vcmask 1040384
      %v451 = vsel %vm450, %v431, %v440
      %v452 = vsel %vm424, %v451, %v449
      %v453 = vld [vmem:[#allocation2] sm:$0x7]
      %v454 = vadd.f32 %v453, %v452
      %455 = vst [vmem:[#allocation2] sm:$0x7] %v454
      // Predicated region
      $region41: #{tpu_custom_call.1} parent=35 // pred_check
        %p456 = pneg %p362
      $region42: #{tpu_custom_call.1} parent=35 // pred_check_branch
        %458 = sbr.rel (%p456) target = $region44
      $region43: #{tpu_custom_call.1} parent=35 // pred_region
        %v459 = vld [vmem:[#allocation2] sm:$0x7]
        %460 = vst [vmem:[%s359] sm:$0x7] %v459
      $region44: #{tpu_custom_call.1} parent=35 // pred_fallthru
        _
      %p461 = scmp.lt.s32.totalorder %s21, 1
      %s462 = scalar_select %p461, %s21, 1
      %p463 = scmp.lt.s32.totalorder %s22, 0
      %s464 = scalar_select %p463, %s22, 0
      %s465 = sadd.s32 %s464, %s462
      %s466 = smul.addr %s465, 4
      %s467 = scalar_lea.vmem %s4, %s466
      // Predicated region
      $region45: #{tpu_custom_call.1} parent=35 // pred_check
        %p468 = pneg %p178
      $region46: #{tpu_custom_call.1} parent=35 // pred_check_branch
        %470 = sbr.rel (%p468) target = $region48
      $region47: #{tpu_custom_call.1} parent=35 // pred_region
        _
      $region48: #{tpu_custom_call.1} parent=35 // pred_fallthru
        _
    $region36: #{tpu_custom_call.1} parent=5 // pred_fallthru
      _
    %p471 = scmp.le.s32.totalorder 2, %s11
    // Predicated region
    $region49: #{tpu_custom_call.1} parent=5 // pred_check
      %p472 = pneg %p471
    $region50: #{tpu_custom_call.1} parent=5 // pred_check_branch
      %474 = sbr.rel (%p472) target = $region52
    $region51: #{tpu_custom_call.1} parent=5 // pred_region
      %s475 = ssub.s32 %s11, 2
      // Predicated region
      $region53: #{tpu_custom_call.1} parent=51 // pred_check
        %p476 = pneg %p184
      $region54: #{tpu_custom_call.1} parent=51 // pred_check_branch
        %478 = sbr.rel (%p476) target = $region56
      $region55: #{tpu_custom_call.1} parent=51 // pred_region
        %p479 = scmp.lt.s32.totalorder %s24, 1
        %s480 = scalar_select %p479, %s24, 1
        %p481 = scmp.lt.s32.totalorder %s25, 0
        %s482 = scalar_select %p481, %s25, 0
        %s483 = sadd.s32 %s482, %s480
        %s484 = smul.addr %s483, 4
        %s485 = scalar_lea.vmem %s4, %s484
      $region56: #{tpu_custom_call.1} parent=51 // pred_fallthru
        _
    $region52: #{tpu_custom_call.1} parent=5 // pred_fallthru
      _
  $region6: #{tpu_custom_call.1} parent=0 // loop_footer
    %s15 = sadd.s32 1, %s11
  $region7: #{tpu_custom_call.1} parent=0 // loop_footer_branch
    %10 = sbr.rel target = $region3
  $region8: #{tpu_custom_call.1} parent=0 // loop_exit
    _

</llo_original>
